<compile_context>
chip_gen: v5e
topology: v5e:2x2
jax: 0.10.0
libtpu: 0.0.40
codegen_flags: <defaults>
</compile_context>

<pallas_src>
import jax
import jax.numpy as jnp
from jax.experimental import pallas as pl
from jax.experimental.pallas import tpu as pltpu

LANE = 128
SUBLANE = 8                    # f32 sublane tile (kernel computes in f32)
SLAB_UNIT = LANE * SUBLANE     # 1024 elements


def _psechsig_math(z_f32, a_f32):
    """(z + a*sech(z+a)) * sigmoid(z) in f32."""
    zpa = z_f32 + a_f32
    sech = 2.0 / (jnp.exp(zpa) + jnp.exp(-zpa))
    return (z_f32 + a_f32 * sech) * jax.nn.sigmoid(z_f32)


def _psechsig_ref(z, a_f32):
    """Plain-jnp reference / tiny-input and tail fallback."""
    return _psechsig_math(z.astype(jnp.float32), a_f32).astype(z.dtype)


def _psechsig_kernel(a_ref, z_ref, o_ref):
    # a_ref: SMEM (1,) float32 learned parameter
    a = a_ref[0]
    z = z_ref[...].astype(jnp.float32)
    o_ref[...] = _psechsig_math(z, a).astype(o_ref.dtype)


def parametric_sechsig(z, a=1.0, *, tile_rows=2048, min_pallas_elems=SLAB_UNIT):
    """Apply ParametricSechSig elementwise to `z` (any shape, any size)."""
    orig_shape = z.shape
    orig_dtype = z.dtype
    n = z.size

    a_f32 = jnp.asarray(a, dtype=jnp.float32).reshape(())

    # Tiny inputs: launch + slab machinery dominates, let XLA fuse it.
    if n < min_pallas_elems:
        return _psechsig_ref(z, a_f32).reshape(orig_shape)

    flat = jnp.ravel(z)

    # Bulk: largest prefix that's a multiple of 8*128 (rows is a multiple of 8,
    # so no input padding / concatenate is needed). Tail handled in jnp below.
    n_main = (n // SLAB_UNIT) * SLAB_UNIT
    rows = n_main // LANE
    slab = flat[:n_main].reshape(rows, LANE)

    # Row-tile: as large as allowed (HBM-bound), multiple of 8. If the grid
    # would collapse to a single step, split in two so v7x's 2 TCs both run.
    tr = min(tile_rows, rows)
    tr = max(SUBLANE, (tr // SUBLANE) * SUBLANE)
    if tr == rows and rows >= 2 * SUBLANE:
        tr = ((rows // 2 + SUBLANE - 1) // SUBLANE) * SUBLANE
    grid = (pl.cdiv(rows, tr),)

    itemsize = jnp.dtype(orig_dtype).itemsize
    cost = pl.CostEstimate(
        flops=6 * n_main,
        transcendentals=3 * n_main,          # 2x exp + sigmoid per element
        bytes_accessed=2 * n_main * itemsize,
    )

    a_param = a_f32.reshape(1)

    out_slab = pl.pallas_call(
        _psechsig_kernel,
        out_shape=jax.ShapeDtypeStruct((rows, LANE), orig_dtype),
        grid_spec=pltpu.PrefetchScalarGridSpec(
            num_scalar_prefetch=0,
            grid=grid,
            in_specs=[
                pl.BlockSpec(memory_space=pltpu.SMEM),       # a (learned scalar)
                pl.BlockSpec((tr, LANE), lambda i: (i, 0)),  # z tile
            ],
            out_specs=pl.BlockSpec((tr, LANE), lambda i: (i, 0)),
        ),
        compiler_params=pltpu.CompilerParams(
            dimension_semantics=("parallel",),
        ),
        cost_estimate=cost,
    )(a_param, slab)

    if n_main < n:
        tail_out = _psechsig_ref(flat[n_main:], a_f32)
        out_flat = jnp.concatenate([out_slab.reshape(-1), tail_out])
    else:
        out_flat = out_slab.reshape(-1)
    return out_flat.reshape(orig_shape)


if __name__ == "__main__":
    key = jax.random.PRNGKey(0)

    # Case 1: NCHW-like input (size is a multiple of 1024 -> pure kernel path,
    # 16 rows split into 2 grid steps).
    a = 0.5
    x = jax.random.normal(key, (2, 4, 16, 16), dtype=jnp.float32)
    y = parametric_sechsig(x, a=a)
    jax.block_until_ready(y)

    y_ref = _psechsig_ref(x, jnp.float32(a))
    assert y.shape == x.shape and y.dtype == x.dtype
    assert jnp.allclose(y, y_ref, atol=1e-5, rtol=1e-5)

    # Case 2: ragged size (1155 elems) -> 1024-element bulk through the kernel
    # plus a 131-element jnp tail.
    x2 = jax.random.normal(jax.random.fold_in(key, 1), (3, 5, 7, 11),
                           dtype=jnp.float32)
    y2 = parametric_sechsig(x2, a=1.0)
    jax.block_until_ready(y2)

    y2_ref = _psechsig_ref(x2, jnp.float32(1.0))
    assert y2.shape == x2.shape and y2.dtype == x2.dtype
    assert jnp.allclose(y2, y2_ref, atol=1e-5, rtol=1e-5)

    print("KERNEL_OK")
</pallas_src>

<mosaic_0001>
module attributes {stable_mosaic.version = 11 : i64} {
  func.func @_psechsig_kernel(%arg0: i32, %arg1: memref<1xf32, #tpu.memory_space<smem>>, %arg2: memref<8x128xf32, #tpu.memory_space<vmem>>, %arg3: memref<8x128xf32, #tpu.memory_space<vmem>>) attributes {dimension_semantics = [#tpu.dimension_semantics<parallel>], iteration_bounds = array<i64: 2>, scalar_prefetch = 0 : i64, scratch_operands = 0 : i64, tpu.core_type = #tpu.core_type<tc>, window_params = [{transform_indices = @transform_0, window_bounds = array<i64: 1>}, {transform_indices = @transform_1, window_bounds = array<i64: 8, 128>}, {transform_indices = @transform_2, window_bounds = array<i64: 8, 128>}]} {
    %c0 = arith.constant 0 : index
    %0 = memref.load %arg1[%c0] : memref<1xf32, #tpu.memory_space<smem>>
    %c0_0 = arith.constant 0 : index
    %c0_1 = arith.constant 0 : index
    %1 = vector.load %arg2[%c0_0, %c0_1] : memref<8x128xf32, #tpu.memory_space<vmem>>, vector<8x128xf32>
    %2 = vector.broadcast %0 : f32 to vector<8x128xf32>
    %3 = arith.addf %1, %2 : vector<8x128xf32>
    %4 = math.exp %3 : vector<8x128xf32>
    %cst = arith.constant 0.000000e+00 : f32
    %5 = vector.broadcast %cst : f32 to vector<8x128xf32>
    %6 = arith.subf %5, %3 : vector<8x128xf32>
    %7 = math.exp %6 : vector<8x128xf32>
    %8 = arith.addf %4, %7 : vector<8x128xf32>
    %cst_2 = arith.constant 2.000000e+00 : f32
    %9 = vector.broadcast %cst_2 : f32 to vector<8x128xf32>
    %10 = arith.divf %9, %8 : vector<8x128xf32>
    %11 = vector.broadcast %0 : f32 to vector<8x128xf32>
    %12 = arith.mulf %11, %10 : vector<8x128xf32>
    %13 = arith.addf %1, %12 : vector<8x128xf32>
    %14 = arith.negf %1 : vector<8x128xf32>
    %15 = math.exp %14 : vector<8x128xf32>
    %cst_3 = arith.constant 1.000000e+00 : f32
    %16 = vector.broadcast %cst_3 : f32 to vector<8x128xf32>
    %17 = arith.addf %16, %15 : vector<8x128xf32>
    %18 = arith.divf %16, %17 : vector<8x128xf32>
    %19 = arith.mulf %13, %18 : vector<8x128xf32>
    %c0_4 = arith.constant 0 : index
    %c0_5 = arith.constant 0 : index
    %20 = vector.load %arg3[%c0_4, %c0_5] : memref<8x128xf32, #tpu.memory_space<vmem>>, vector<8x128xf32>
    tpu.vector_store %arg3[%c0_4, %c0_5], %19 {strides = array<i32>} : memref<8x128xf32, #tpu.memory_space<vmem>>, vector<8x128xf32>,
    return
  }
  func.func @transform_0(%arg0: i32) -> i32 {
    %c0_i32 = arith.constant 0 : i32
    %c0_i32_0 = arith.constant 0 : i32
    return %c0_i32 : i32
  }
  func.func @transform_1(%arg0: i32) -> (i32, i32) {
    %c0_i32 = arith.constant 0 : i32
    %c0_i32_0 = arith.constant 0 : i32
    return %arg0, %c0_i32 : i32, i32
  }
  func.func @transform_2(%arg0: i32) -> (i32, i32) {
    %c0_i32 = arith.constant 0 : i32
    %c0_i32_0 = arith.constant 0 : i32
    return %arg0, %c0_i32 : i32, i32
  }
}

</mosaic_0001>

<llo_original>
// kernel: tpu_custom_call.1
$region0: #{tpu_custom_call.1}
  #allocation0 [shape = 'u32[]', space=smem, size = 0x4, offset = 0x4, fixed_abs, tag = 'smem constant byte address 0x4 - core index']
  #allocation1 [shape = 'u32[72,128]{1,0:T(1,128)}', space=vmem, size = 0x9000, scoped, tag = 'internal scratch']
  #allocation2 [shape = 'f32[1]{0:T(128)S(6)}', space=smem, size = 0x200, scoped, tag = 'scoped memory for tpu_custom_call.1']
  %s0 = inlined_call_operand.<no memory space> [shape: f32[1], index: 0, kind: input, shape index: {}]
  %s1 = inlined_call_operand.hbm [shape: f32[16,128], index: 1, kind: input, shape index: {}]
  %s2 = inlined_call_operand.hbm [shape: f32[16,128], index: 2, kind: output, shape index: {}]
  %s3 = sld [smem:[#allocation0]]
  $region45: #{tpu_custom_call.1} parent=0
    _
  %s5 = ssub.s32 1, %s3
  %s6 = scalar_select 0, %s5, %s3
  %7 = sst [smem:[#allocation2]] %s0
  $region1: #{tpu_custom_call.1} parent=0
    #allocation3 [shape = 'u8[8192]{0}', space=vmem, size = 0x2000, scoped, tag = 'input window, operand 1']
    #allocation4 [shape = 's32[2]{0}', space=sflag, size = 0x8, scoped, tag = 'scoped memory for tpu_custom_call.1']
    #allocation5 [shape = 's32[2]{0}', space=sflag, size = 0x8, scoped, tag = 'scoped memory for tpu_custom_call.1']
    #allocation6 [shape = 'u8[8192]{0}', space=vmem, size = 0x2000, scoped, tag = 'output window, operand 0']
    %8 = vsyncpa [#allocation4], 0
    %s9 = scalar_lea.sflag [#allocation4], 1
    %10 = vsyncpa %s9, 0
    %11 = vsyncpa [#allocation5], 0
    %s12 = scalar_lea.sflag [#allocation5], 1
    %13 = vsyncpa %s12, 0
    loop: start=0, step=1, limit=4
    $region2: #{tpu_custom_call.1} parent=1 // loop_pre_header
      _
    $region3: #{tpu_custom_call.1} parent=1 // loop_header
      %s15 = sphi 0, %s19
      %p16 = scmp.ge.s32.totalorder %s15, 4
      %s23 = sphi 0, %s23
      %s25 = sphi 0, %s23
      %s26 = sphi 0, %s25
      %s40 = sphi 0, %s26
      %s46 = sphi 0, %s48
      %s49 = sphi 0, %s46
      %s50 = sphi 0, %s49
      %s66 = sphi 0, %s50
      %s72 = sphi 0, %s74
      %s75 = sphi 0, %s72
      %s76 = sphi 0, %s75
      %s92 = sphi 0, %s76
    $region4: #{tpu_custom_call.1} parent=1 // loop_header_branch
      %18 = sbr.rel (%p16) target = $region8
    $region5: #{tpu_custom_call.1} parent=1 // loop_body
      %s20 = ssub.s32 %s15, 1
      %s21 = ssub.s32 %s15, 2
      %s22 = sadd.s32 %s15, 1
      %s24 = sadd.s32 %s23, 1
      %p27 = scmp.eq.s32.totalorder %s15, 1
      %p28 = scmp.ne.s32.totalorder %s23, %s25
      %p29 = scmp.eq.s32.totalorder %s15, 0
      %p30 = por %p28, %p29
      %p31 = scmp.ne.s32.totalorder %s23, %s25
      %p32 = scmp.eq.s32.totalorder %s20, 1
      %p33 = por %p31, %p32
      %p34 = scmp.ne.s32.totalorder %s25, %s26
      %p35 = scmp.eq.s32.totalorder %s20, 0
      %p36 = por %p34, %p35
      %p37 = scmp.ne.s32.totalorder %s25, %s26
      %p38 = scmp.eq.s32.totalorder %s21, 1
      %p39 = por %p37, %p38
      %p41 = scmp.ne.s32.totalorder %s26, %s40
      %p42 = scmp.eq.s32.totalorder %s21, 0
      %p43 = por %p41, %p42
      %s44 = ssub.s32 %s15, %s22
      %p45 = scmp.eq.s32.totalorder %s44, 0
      %s47 = sadd.s32 %s46, 1
      %s48 = scalar_select %p45, %s46, %s47
      %p51 = pneg %p45
      %p52 = scmp.eq.s32.totalorder %s15, 1
      %p53 = por %p51, %p52
      %p54 = scmp.ne.s32.totalorder %s46, %s49
      %p55 = scmp.eq.s32.totalorder %s15, 0
      %p56 = por %p54, %p55
      %p57 = scmp.ne.s32.totalorder %s46, %s49
      %p58 = scmp.eq.s32.totalorder %s20, 1
      %p59 = por %p57, %p58
      %p60 = scmp.ne.s32.totalorder %s49, %s50
      %p61 = scmp.eq.s32.totalorder %s20, 0
      %p62 = por %p60, %p61
      %p63 = scmp.ne.s32.totalorder %s49, %s50
      %p64 = scmp.eq.s32.totalorder %s21, 1
      %p65 = por %p63, %p64
      %p67 = scmp.ne.s32.totalorder %s50, %s66
      %p68 = scmp.eq.s32.totalorder %s21, 0
      %p69 = por %p67, %p68
      %s70 = ssub.s32 %s15, %s22
      %p71 = scmp.eq.s32.totalorder %s70, 0
      %s73 = sadd.s32 %s72, 1
      %s74 = scalar_select %p71, %s72, %s73
      %p77 = pneg %p71
      %p78 = scmp.eq.s32.totalorder %s15, 1
      %p79 = por %p77, %p78
      %p80 = scmp.ne.s32.totalorder %s72, %s75
      %p81 = scmp.eq.s32.totalorder %s15, 0
      %p82 = por %p80, %p81
      %p83 = scmp.ne.s32.totalorder %s72, %s75
      %p84 = scmp.eq.s32.totalorder %s20, 1
      %p85 = por %p83, %p84
      %p86 = scmp.ne.s32.totalorder %s75, %s76
      %p87 = scmp.eq.s32.totalorder %s20, 0
      %p88 = por %p86, %p87
      %p89 = scmp.ne.s32.totalorder %s75, %s76
      %p90 = scmp.eq.s32.totalorder %s21, 1
      %p91 = por %p89, %p90
      %p93 = scmp.ne.s32.totalorder %s76, %s92
      %p94 = scmp.eq.s32.totalorder %s21, 0
      %p95 = por %p93, %p94
      %p96 = scmp.le.s32.totalorder 1, %s15
      %p97 = scmp.lt.s32.totalorder %s15, 3
      %p98 = pnand %p96, %p97
      %p99 = pneg %p98
      // Predicated region
      $region9: #{tpu_custom_call.1} parent=5 // pred_check
        _
      $region10: #{tpu_custom_call.1} parent=5 // pred_check_branch
        %101 = sbr.rel (%p98) target = $region12
      $region11: #{tpu_custom_call.1} parent=5 // pred_region
        %s102 = ssub.s32 %s15, 1
        // Predicated region
        $region13: #{tpu_custom_call.1} parent=11 // pred_check
          %p103 = pneg %p36
        $region14: #{tpu_custom_call.1} parent=11 // pred_check_branch
          %105 = sbr.rel (%p103) target = $region16
        $region15: #{tpu_custom_call.1} parent=11 // pred_region
          _
        $region16: #{tpu_custom_call.1} parent=11 // pred_fallthru
          _
      $region12: #{tpu_custom_call.1} parent=5 // pred_fallthru
        _
      %p106 = scmp.lt.s32.totalorder %s15, 2
      // Predicated region
      $region17: #{tpu_custom_call.1} parent=5 // pred_check
        %p107 = pneg %p106
      $region18: #{tpu_custom_call.1} parent=5 // pred_check_branch
        %109 = sbr.rel (%p107) target = $region20
      $region19: #{tpu_custom_call.1} parent=5 // pred_region
        // Predicated region
        $region21: #{tpu_custom_call.1} parent=19 // pred_check
          %p110 = pneg %p56
        $region22: #{tpu_custom_call.1} parent=19 // pred_check_branch
          %112 = sbr.rel (%p110) target = $region24
        $region23: #{tpu_custom_call.1} parent=19 // pred_region
          %s113 = sand.u32 %s46, 1
          %s114 = scalar_lea.sflag [#allocation4], %s113
          %s115 = sand.u32 %s46, 1
          %s116 = smul.addr %s115, 8
          %s117 = scalar_lea.vmem [#allocation3], %s116
          %119 = vsyncadd %s114, 0
          %s120 = smul.addr %s15, 8
          %s121 = scalar_lea.hbm %s1, %s120
          %s123 = sshll.u32 %s121, 4
          %s124 = int_to_ptr.hbm [resolvable:$true] %s123
          %s125 = sshll.u32 %s117, 4
          %s126 = int_to_ptr.vmem [resolvable:$true] %s125
          %128 = dma.hbm_to_vmem [thread:$0]  %s124, 128, %s126, %s114
        $region24: #{tpu_custom_call.1} parent=19 // pred_fallthru
          _
      $region20: #{tpu_custom_call.1} parent=5 // pred_fallthru
        _
      %p129 = scmp.le.s32.totalorder 1, %s15
      %p130 = scmp.lt.s32.totalorder %s15, 3
      %p131 = pnand %p129, %p130
      %p132 = pneg %p131
      // Predicated region
      $region25: #{tpu_custom_call.1} parent=5 // pred_check
        _
      $region26: #{tpu_custom_call.1} parent=5 // pred_check_branch
        %134 = sbr.rel (%p131) target = $region28
      $region27: #{tpu_custom_call.1} parent=5 // pred_region
        %s135 = ssub.s32 %s15, 1
        %s136 = sand.u32 %s49, 1
        %s137 = scalar_lea.sflag [#allocation4], %s136
        %s138 = sand.u32 %s49, 1
        %s139 = smul.addr %s138, 8
        %s140 = scalar_lea.vmem [#allocation3], %s139
        // Predicated region
        $region29: #{tpu_custom_call.1} parent=27 // pred_check
          %p141 = pneg %p62
        $region30: #{tpu_custom_call.1} parent=27 // pred_check_branch
          %143 = sbr.rel (%p141) target = $region32
        $region31: #{tpu_custom_call.1} parent=27 // pred_region
          %145 = dma.done %s137, 128
        $region32: #{tpu_custom_call.1} parent=27 // pred_fallthru
          _
        %p146 = pneg %p36
        %p147 = pneg %p33
        %s148 = sand.u32 %s49, 1
        %s149 = scalar_lea.sflag [#allocation4], %s148
        %s150 = sand.u32 %s49, 1
        %s151 = smul.addr %s150, 8
        %s152 = scalar_lea.vmem [#allocation3], %s151
        %p153 = pneg %p62
        %p154 = pneg %p59
        %p155 = pneg %p88
        %p156 = pneg %p85
        %s157 = sand.u32 %s75, 1
        %s158 = scalar_lea.sflag [#allocation5], %s157
        %s159 = sand.u32 %s75, 1
        %s160 = smul.addr %s159, 8
        %s161 = scalar_lea.vmem [#allocation6], %s160
        %s162 = sld [smem:[#allocation2]]
        %v163 = vld [vmem:[%s140] sm:$0xff]
        %v164 = vstv %s162
        %v165 = vadd.f32 %v163, %v164
        %v166 = vmul.f32 %v165, 1.442695
        %v167 = vpow.pop %v166
        %v168 = vsub.f32 0.0, %v165
        %v169 = vmul.f32 %v168, 1.442695
        %v170 = vpow.pop %v169
        %v171 = vadd.f32 %v167, %v170
        %v172 = vrcp.pop %v171
        %v173 = vmul.f32 %v171, %v172
        %v174 = vsub.f32 1.0, %v173
        %v175 = vmul.f32 %v172, %v174
        %v176 = vadd.f32 %v172, %v175
        %vm177 = vweird.f32 %v171
        %vm178 = vweird.f32 %v172
        %vm179 = vmor %vm177, %vm178
        %v180 = vsel %vm179, %v172, %v176
        %v181 = vand.u32 2147483647, %v171
        %vm182 = vcmp.eq.f32.partialorder %v181, 8.507059e+37
        %v183 = vand.u32 %v171, 2147483648
        %v184 = vor.u32 1.1754944e-38, %v183
        %v185 = vsel %vm182, %v184, %v180
        %v186 = vmul.f32 2.0, %v185
        %v187 = vmul.f32 %v164, %v186
        %v188 = vadd.f32 %v163, %v187
        %v189 = vxor.u32 %v163, 2147483648
        %v190 = vmul.f32 %v189, 1.442695
        %v191 = vpow.pop %v190
        %v192 = vadd.f32 %v191, 1.0
        %v193 = vrcp.pop %v192
        %v194 = vmul.f32 %v192, %v193
        %v195 = vsub.f32 1.0, %v194
        %v196 = vmul.f32 %v193, %v195
        %v197 = vadd.f32 %v193, %v196
        %vm198 = vweird.f32 %v192
        %vm199 = vweird.f32 %v193
        %vm200 = vmor %vm198, %vm199
        %v201 = vsel %vm200, %v193, %v197
        %v202 = vand.u32 2147483647, %v192
        %vm203 = vcmp.eq.f32.partialorder %v202, 8.507059e+37
        %v204 = vand.u32 %v192, 2147483648
        %v205 = vor.u32 1.1754944e-38, %v204
        %v206 = vsel %vm203, %v205, %v201
        %v207 = vmul.f32 1.0, %v206
        %v208 = vmul.f32 %v188, %v207
        %209 = vst [vmem:[%s161] sm:$0xff] %v208
        %s210 = sand.u32 %s75, 1
        %s211 = scalar_lea.sflag [#allocation5], %s210
        %s212 = sand.u32 %s75, 1
        %s213 = smul.addr %s212, 8
        %s214 = scalar_lea.vmem [#allocation6], %s213
        // Predicated region
        $region33: #{tpu_custom_call.1} parent=27 // pred_check
          %p215 = pneg %p85
        $region34: #{tpu_custom_call.1} parent=27 // pred_check_branch
          %217 = sbr.rel (%p215) target = $region36
        $region35: #{tpu_custom_call.1} parent=27 // pred_region
          %219 = vsyncadd %s211, 0
          %s220 = smul.addr %s20, 8
          %s221 = scalar_lea.hbm %s2, %s220
          %s223 = sshll.u32 %s214, 4
          %s224 = int_to_ptr.vmem [resolvable:$true] %s223
          %s225 = sshll.u32 %s221, 4
          %s226 = int_to_ptr.hbm [resolvable:$true] %s225
          %228 = dma.vmem_to_hbm [thread:$0]  %s224, 128, %s226, %s211
        $region36: #{tpu_custom_call.1} parent=27 // pred_fallthru
          _
      $region28: #{tpu_custom_call.1} parent=5 // pred_fallthru
        _
      %p229 = scmp.le.s32.totalorder 2, %s15
      // Predicated region
      $region37: #{tpu_custom_call.1} parent=5 // pred_check
        %p230 = pneg %p229
      $region38: #{tpu_custom_call.1} parent=5 // pred_check_branch
        %232 = sbr.rel (%p230) target = $region40
      $region39: #{tpu_custom_call.1} parent=5 // pred_region
        %s233 = ssub.s32 %s15, 2
        // Predicated region
        $region41: #{tpu_custom_call.1} parent=39 // pred_check
          %p234 = pneg %p91
        $region42: #{tpu_custom_call.1} parent=39 // pred_check_branch
          %236 = sbr.rel (%p234) target = $region44
        $region43: #{tpu_custom_call.1} parent=39 // pred_region
          %s237 = sand.u32 %s76, 1
          %s238 = scalar_lea.sflag [#allocation5], %s237
          %s239 = sand.u32 %s76, 1
          %s240 = smul.addr %s239, 8
          %s241 = scalar_lea.vmem [#allocation6], %s240
          %243 = dma.done %s238, 128
        $region44: #{tpu_custom_call.1} parent=39 // pred_fallthru
          _
      $region40: #{tpu_custom_call.1} parent=5 // pred_fallthru
        _
    $region6: #{tpu_custom_call.1} parent=1 // loop_footer
      %s19 = sadd.s32 1, %s15
    $region7: #{tpu_custom_call.1} parent=1 // loop_footer_branch
      %14 = sbr.rel target = $region3
    $region8: #{tpu_custom_call.1} parent=1 // loop_exit
      _
    %244 = vsyncpa [#allocation4], 1
    %s245 = scalar_lea.sflag [#allocation4], 1
    %246 = vsyncpa %s245, 1
    %247 = vsyncpa [#allocation5], 1
    %s248 = scalar_lea.sflag [#allocation5], 1
    %249 = vsyncpa %s248, 1

</llo_original>
